<compile_context>
chip_gen: v5e
topology: v5e:2x2
jax: 0.10.0
libtpu: 0.0.40
codegen_flags: <defaults>
</compile_context>

<pallas_src>
import functools

import jax
import jax.numpy as jnp
from jax.experimental import pallas as pl
from jax.experimental.pallas import tpu as pltpu


# ----------------------------------------------------------------------------
# Kernel
# ----------------------------------------------------------------------------

def _accumulate_tile(x, t, valid, isum_ref, csum_ref):
    """Shared per-tile math: per-token softmax over classes, one-hot, sums.

    x     : (C, TN) f32   logits (pre-masked on the slow path)
    t     : (1, TN) int32 targets
    valid : (1, TN) bool  tokens that should contribute
    """
    # Per-token softmax over the class (sublane) axis.
    m = jnp.max(x, axis=0, keepdims=True)                 # (1, TN)
    e = jnp.exp(x - m)                                     # (C, TN)  EUP
    d = jnp.sum(e, axis=0, keepdims=True)                  # (1, TN)
    r = pl.reciprocal(d, approx=True)                      # EUP approx recip
    r = r * (2.0 - d * r)                                  # Newton step -> ~f32
    probs = e * r
    probs = jnp.where(valid, probs, 0.0)                   # zero invalid tokens

    # One-hot with the valid mask folded into the compare (selects only).
    cls = jax.lax.broadcasted_iota(jnp.int32, x.shape, 0)  # (C, TN)
    hit = (cls == t) & valid                                # (C, TN) bool
    onehot = hit.astype(jnp.float32)

    # Per-class partial sums over this tile's tokens.
    isum_ref[...] += jnp.sum(jnp.where(hit, probs, 0.0), axis=1, keepdims=True)
    csum_ref[...] += jnp.sum(probs + onehot, axis=1, keepdims=True)


def _dice_partial_kernel(logits_ref, targets_ref, isum_ref, csum_ref, *,
                         n_tokens, blocks_per_core, tile_n, ignore_index):
    """One (core, token-tile) step: accumulate per-class partial sums.

    logits_ref : (C, TN)  native dtype, tokens on the lane axis
    targets_ref: (1, TN)  int32
    isum_ref   : (C, 1)   f32  per-core partial sum of probs * onehot
    csum_ref   : (C, 1)   f32  per-core partial sum of probs + onehot
    """
    p = pl.program_id(0)          # core index
    s = pl.program_id(1)          # token-tile step within this core

    @pl.when(s == 0)
    def _():
        isum_ref[...] = jnp.zeros_like(isum_ref)
        csum_ref[...] = jnp.zeros_like(csum_ref)

    t = targets_ref[...]                                   # (1, TN) int32

    # Global start of this tile, from the *unclamped* block index, so fully
    # out-of-range (clamped, re-read) tiles mask to zero on the slow path.
    block_idx = p * blocks_per_core + s
    tile_start = block_idx * tile_n
    is_full = (tile_start + tile_n) <= n_tokens            # scalar bool

    # ---- Fast path: full in-range tile --------------------------------------
    # No token-index iota / bound compares / pre-exp masking; every logit is
    # real data so exp cannot see garbage.  Validity is just != ignore_index.
    @pl.when(is_full)
    def _fast():
        x = logits_ref[...].astype(jnp.float32)            # (C, TN)
        valid = t != ignore_index                          # (1, TN)
        _accumulate_tile(x, t, valid, isum_ref, csum_ref)

    # ---- Slow path: ragged tail / clamped re-read tile ----------------------
    @pl.when(jnp.logical_not(is_full))
    def _slow():
        x = logits_ref[...].astype(jnp.float32)
        tok = tile_start + jax.lax.broadcasted_iota(jnp.int32, t.shape, 1)
        valid = (tok < n_tokens) & (t != ignore_index)
        # Neutralize OOB lanes BEFORE exp so garbage VMEM contents can never
        # produce Inf/NaN that would poison the sums.
        x = jnp.where(valid, x, 0.0)
        _accumulate_tile(x, t, valid, isum_ref, csum_ref)


# ----------------------------------------------------------------------------
# Wrapper helpers
# ----------------------------------------------------------------------------

def _derive_tile_n(n, c, logits_itemsize):
    """Token-tile size from a VMEM budget that is safe on v5e/v6e/v7x."""
    # Sub-32-bit dtypes pack along sublanes: a (C, tn) bf16 block pads C to a
    # multiple of 16 sublanes (f32 -> 8).
    sublane_pack = max(1, 4 // max(1, logits_itemsize)) * 8
    c_pad = -(-c // sublane_pack) * sublane_pack
    logits_col = c_pad * logits_itemsize                   # bytes per token column
    targets_col = 8 * 4                                    # (1, tn) i32 pads to 8 sublanes
    # Double-buffered inputs + ~8 live (8, tn)-sized f32 temporaries in the body.
    per_tok = 2 * (logits_col + targets_col) + 8 * 8 * 4
    budget = 16 * 1024 * 1024                              # << 32 MiB v7x scoped limit
    tn = budget // per_tok
    tn = max(512, min(32768, (tn // 512) * 512))
    # Don't make the tile (much) larger than the token axis itself.
    tn = min(tn, max(128, -(-n // 128) * 128))
    return tn


def _num_tensorcores():
    """TensorCores per JAX device: 2 on v7x, 1 on v5e/v6e (defensive probe)."""
    try:
        info = pltpu.get_tpu_info()
        for attr in ("num_cores", "core_count", "num_tensorcores",
                     "tensor_core_count", "cores_per_chip"):
            v = getattr(info, attr, None)
            if isinstance(v, int) and v >= 1:
                return min(v, 2)
    except Exception:
        pass
    try:
        kind = jax.devices()[0].device_kind.lower()
        if "v7" in kind:
            return 2
    except Exception:
        pass
    return 1


# ----------------------------------------------------------------------------
# Public entry point
# ----------------------------------------------------------------------------

def dice_loss(logits, targets, num_classes, ignore_index=-100, smooth=1.0,
              reduction="mean", tile_n=None, ncores=None, class_major=False):
    """Pallas implementation of DiceLoss.forward (NER dice loss).

    class_major=True: `logits` is already [num_classes, N] (tokens on the last
    axis).  Preferred for performance — skips the wrapper-side transpose,
    which is otherwise a full extra HBM read+write pass over the logits.
    """
    if class_major:
        assert logits.shape[0] == num_classes
        logits_t = logits                                  # (C, N), native dtype
        n = logits_t.shape[1]
        targets = targets.reshape(-1)
        assert targets.shape[0] == n
    else:
        if logits.ndim == 3:
            logits = logits.reshape(-1, num_classes)
            targets = targets.reshape(-1)
        n, c = logits.shape
        assert c == num_classes
        # Lane-dense layout for small C: tokens on the 128-lane axis.
        # TODO(synk): this `.T` is a separate XLA pass over the logits; produce
        # [C, N] upstream (classifier matmul layout) and call with
        # class_major=True to avoid it.
        logits_t = logits.T                                # (C, N), native dtype

    c = num_classes
    targets_2d = targets.astype(jnp.int32).reshape(1, n)   # (1, N)

    if tile_n is None:
        tn = _derive_tile_n(n, c, logits_t.dtype.itemsize)
    else:
        tn = max(128, -(-int(tile_n) // 128) * 128)

    total_blocks = pl.cdiv(n, tn)

    detected_cores = _num_tensorcores()
    if ncores is None:
        ncores = detected_cores if total_blocks >= detected_cores else 1
    ncores = max(1, min(int(ncores), total_blocks))
    bpc = pl.cdiv(total_blocks, ncores)                    # blocks per core
    grid = (ncores, bpc)

    if ncores > 1 and detected_cores >= ncores:
        # Real multi-TensorCore split (v7x): make sure codegen shards it.
        dim_sem = (pltpu.CORE_PARALLEL, pltpu.ARBITRARY)
    elif ncores > 1:
        dim_sem = ("parallel", "arbitrary")
    else:
        dim_sem = ("arbitrary", "arbitrary")

    def _tok_block(p, s):
        # Clamp so a core's trailing (fully out-of-range) steps re-read a valid
        # block; the in-kernel slow-path mask zeroes their contribution.
        return jnp.minimum(p * bpc + s, total_blocks - 1)

    kernel = functools.partial(
        _dice_partial_kernel, n_tokens=n, blocks_per_core=bpc, tile_n=tn,
        ignore_index=ignore_index)

    isum, csum = pl.pallas_call(
        kernel,
        out_shape=[jax.ShapeDtypeStruct((ncores, c, 1), jnp.float32),
                   jax.ShapeDtypeStruct((ncores, c, 1), jnp.float32)],
        grid_spec=pltpu.PrefetchScalarGridSpec(
            num_scalar_prefetch=0,
            grid=grid,
            in_specs=[
                pl.BlockSpec((c, tn), lambda p, s: (0, _tok_block(p, s))),
                pl.BlockSpec((1, tn), lambda p, s: (0, _tok_block(p, s))),
            ],
            out_specs=[
                # Per-core partial accumulators, resident across the reduction
                # axis; each core writes its own row -> no race.
                pl.BlockSpec((None, c, 1), lambda p, s: (p, 0, 0)),
                pl.BlockSpec((None, c, 1), lambda p, s: (p, 0, 0)),
            ],
        ),
        compiler_params=pltpu.CompilerParams(
            dimension_semantics=dim_sem,
            vmem_limit_bytes=32 * 1024 * 1024),
    )(logits_t, targets_2d)

    # Tiny O(C) finalize in plain JAX (exact f32 divide).
    intersect = jnp.sum(isum[:, :, 0], axis=0)             # (C,)
    cardinality = jnp.sum(csum[:, :, 0], axis=0)           # (C,)
    dice = (2.0 * intersect + smooth) / (cardinality + smooth)
    loss = 1.0 - dice
    if num_classes > 1:
        loss = loss[1:]                                    # drop "O"/background class
    if reduction == "mean":
        return jnp.mean(loss)
    elif reduction == "sum":
        return jnp.sum(loss)
    # TODO(synk): when every target is ignore_index and reduction == 'none',
    # PyTorch returns a scalar 0.0 while this returns a (C-1,) zero vector.
    return loss


# ----------------------------------------------------------------------------
# Pure-JAX reference (mirrors the PyTorch module) for verification
# ----------------------------------------------------------------------------

def _reference_dice_loss(logits, targets, num_classes, ignore_index=-100,
                         smooth=1.0, reduction="mean"):
    logits = logits.reshape(-1, num_classes).astype(jnp.float32)
    targets = targets.reshape(-1)
    valid = (targets != ignore_index)
    probs = jax.nn.softmax(logits, axis=1)
    onehot = jax.nn.one_hot(jnp.where(valid, targets, 0), num_classes,
                            dtype=jnp.float32)
    vf = valid[:, None].astype(jnp.float32)
    probs = probs * vf
    onehot = onehot * vf
    intersect = jnp.sum(probs * onehot, axis=0)
    cardinality = jnp.sum(probs + onehot, axis=0)
    dice = (2.0 * intersect + smooth) / (cardinality + smooth)
    loss = 1.0 - dice
    if num_classes > 1:
        loss = loss[1:]
    if reduction == "mean":
        return jnp.mean(loss)
    elif reduction == "sum":
        return jnp.sum(loss)
    return loss


if __name__ == "__main__":
    num_classes = 5
    ignore_index = -100
    tol = 1e-4   # tightened from 2e-3: Newton-refined reciprocal ~ f32 exact

    # --- case 1: small f32 inputs, shapes straight from the NER module -------
    key = jax.random.PRNGKey(0)
    k1, k2, k3 = jax.random.split(key, 3)
    batch, seq = 2, 8
    logits = jax.random.normal(k1, (batch, seq, num_classes), dtype=jnp.float32)
    targets = jax.random.randint(k2, (batch, seq), 0, num_classes,
                                 dtype=jnp.int32)
    targets = jnp.where(jax.random.bernoulli(k3, 0.25, (batch, seq)),
                        ignore_index, targets)

    out = dice_loss(logits, targets, num_classes, ignore_index=ignore_index,
                    smooth=1.0, reduction="mean")
    out = jax.block_until_ready(out)
    ref = _reference_dice_loss(logits, targets, num_classes,
                               ignore_index=ignore_index, smooth=1.0,
                               reduction="mean")
    assert jnp.allclose(out, ref, atol=tol, rtol=tol), (out, ref)

    # --- case 2: bf16 logits, ragged token count, forced small tiles so that
    #     the multi-tile grid, the 2-core partial path, the interior fast path
    #     AND the masked ragged/clamped tail all get exercised -----------------
    k4, k5, k6 = jax.random.split(jax.random.PRNGKey(1), 3)
    batch, seq = 4, 75                                     # n = 300 tokens
    logits_bf16 = jax.random.normal(
        k4, (batch, seq, num_classes), dtype=jnp.float32).astype(jnp.bfloat16)
    targets2 = jax.random.randint(k5, (batch, seq), 0, num_classes,
                                  dtype=jnp.int32)
    targets2 = jnp.where(jax.random.bernoulli(k6, 0.2, (batch, seq)),
                         ignore_index, targets2)

    out2 = dice_loss(logits_bf16, targets2, num_classes,
                     ignore_index=ignore_index, smooth=1.0, reduction="mean",
                     tile_n=128, ncores=2)                 # 3 blocks / 2 cores
    out2 = jax.block_until_ready(out2)
    ref2 = _reference_dice_loss(logits_bf16, targets2, num_classes,
                                ignore_index=ignore_index, smooth=1.0,
                                reduction="mean")
    assert jnp.allclose(out2, ref2, atol=tol, rtol=tol), (out2, ref2)

    # --- case 3: class-major ([C, N]) input path — no wrapper transpose ------
    logits_cn = logits_bf16.reshape(-1, num_classes).T     # (C, N)
    out3 = dice_loss(logits_cn, targets2, num_classes,
                     ignore_index=ignore_index, smooth=1.0, reduction="mean",
                     tile_n=128, class_major=True)
    out3 = jax.block_until_ready(out3)
    assert jnp.allclose(out3, ref2, atol=tol, rtol=tol), (out3, ref2)

    print("KERNEL_OK")
</pallas_src>

<mosaic_0001>
module attributes {stable_mosaic.version = 11 : i64} {
  func.func @_dice_partial_kernel(%arg0: i32, %arg1: i32, %arg2: memref<5x128xf32, #tpu.memory_space<vmem>>, %arg3: memref<1x128xi32, #tpu.memory_space<vmem>>, %arg4: memref<1x5x1xf32, #tpu.memory_space<vmem>>, %arg5: memref<1x5x1xf32, #tpu.memory_space<vmem>>) attributes {dimension_semantics = [#tpu.dimension_semantics<arbitrary>, #tpu.dimension_semantics<arbitrary>], iteration_bounds = array<i64: 1, 1>, scalar_prefetch = 0 : i64, scratch_operands = 0 : i64, tpu.core_type = #tpu.core_type<tc>, window_params = [{transform_indices = @transform_0, window_bounds = array<i64: 5, 128>}, {transform_indices = @transform_1, window_bounds = array<i64: 1, 128>}, {transform_indices = @transform_2, window_bounds = array<i64: 1, 5, 1>}, {transform_indices = @transform_3, window_bounds = array<i64: 1, 5, 1>}]} {
    %c0_i32 = arith.constant 0 : i32
    %0 = arith.cmpi eq, %arg1, %c0_i32 : i32
    %1 = arith.extui %0 : i1 to i32
    %c0_i32_0 = arith.constant 0 : i32
    %2 = arith.cmpi ne, %1, %c0_i32_0 : i32
    scf.if %2 {
      %cst = arith.constant 0.000000e+00 : f32
      %14 = vector.broadcast %cst : f32 to vector<5x1xf32>
      %c0_5 = arith.constant 0 : index
      %c0_6 = arith.constant 0 : index
      %c0_7 = arith.constant 0 : index
      %15 = vector.load %arg4[%c0_5, %c0_6, %c0_7] : memref<1x5x1xf32, #tpu.memory_space<vmem>>, vector<1x5x1xf32>
      %16 = vector.shape_cast %15 : vector<1x5x1xf32> to vector<5x1xf32>
      %17 = vector.shape_cast %14 : vector<5x1xf32> to vector<1x5x1xf32>
      tpu.vector_store %arg4[%c0_5, %c0_6, %c0_7], %17 {strides = array<i32>} : memref<1x5x1xf32, #tpu.memory_space<vmem>>, vector<1x5x1xf32>,
      %cst_8 = arith.constant 0.000000e+00 : f32
      %18 = vector.broadcast %cst_8 : f32 to vector<5x1xf32>
      %c0_9 = arith.constant 0 : index
      %c0_10 = arith.constant 0 : index
      %c0_11 = arith.constant 0 : index
      %19 = vector.load %arg5[%c0_9, %c0_10, %c0_11] : memref<1x5x1xf32, #tpu.memory_space<vmem>>, vector<1x5x1xf32>
      %20 = vector.shape_cast %19 : vector<1x5x1xf32> to vector<5x1xf32>
      %21 = vector.shape_cast %18 : vector<5x1xf32> to vector<1x5x1xf32>
      tpu.vector_store %arg5[%c0_9, %c0_10, %c0_11], %21 {strides = array<i32>} : memref<1x5x1xf32, #tpu.memory_space<vmem>>, vector<1x5x1xf32>,
    } else {
    }
    %c0 = arith.constant 0 : index
    %c0_1 = arith.constant 0 : index
    %3 = vector.load %arg3[%c0, %c0_1] : memref<1x128xi32, #tpu.memory_space<vmem>>, vector<1x128xi32>
    %c1_i32 = arith.constant 1 : i32
    %4 = arith.muli %arg0, %c1_i32 : i32
    %5 = arith.addi %4, %arg1 : i32
    %c128_i32 = arith.constant 128 : i32
    %6 = arith.muli %5, %c128_i32 : i32
    %c128_i32_2 = arith.constant 128 : i32
    %7 = arith.addi %6, %c128_i32_2 : i32
    %c16_i32 = arith.constant 16 : i32
    %8 = arith.cmpi sle, %7, %c16_i32 : i32
    %9 = arith.extui %8 : i1 to i32
    %c0_i32_3 = arith.constant 0 : i32
    %10 = arith.cmpi ne, %9, %c0_i32_3 : i32
    scf.if %10 {
      %c0_5 = arith.constant 0 : index
      %c0_6 = arith.constant 0 : index
      %14 = vector.load %arg2[%c0_5, %c0_6] : memref<5x128xf32, #tpu.memory_space<vmem>>, vector<5x128xf32>
      %c-100_i32 = arith.constant -100 : i32
      %15 = vector.broadcast %c-100_i32 : i32 to vector<1x128xi32>
      %16 = arith.cmpi ne, %3, %15 : vector<1x128xi32>
      %cst = arith.constant dense<0xFF800000> : vector<128xf32>
      %17 = vector.multi_reduction <maximumf>, %14, %cst [0] : vector<5x128xf32> to vector<128xf32>
      %18 = vector.shape_cast %17 : vector<128xf32> to vector<1x128xf32>
      %19 = vector.broadcast %18 : vector<1x128xf32> to vector<5x128xf32>
      %20 = arith.subf %14, %19 : vector<5x128xf32>
      %21 = math.exp %20 : vector<5x128xf32>
      %cst_7 = arith.constant dense<0.000000e+00> : vector<128xf32>
      %22 = vector.multi_reduction <add>, %21, %cst_7 [0] : vector<5x128xf32> to vector<128xf32>
      %23 = vector.shape_cast %22 : vector<128xf32> to vector<1x128xf32>
      %24 = tpu.reciprocal %23 {approx = true} : vector<1x128xf32> -> vector<1x128xf32>
      %25 = arith.mulf %23, %24 : vector<1x128xf32>
      %cst_8 = arith.constant 2.000000e+00 : f32
      %26 = vector.broadcast %cst_8 : f32 to vector<1x128xf32>
      %27 = arith.subf %26, %25 : vector<1x128xf32>
      %28 = arith.mulf %24, %27 : vector<1x128xf32>
      %29 = vector.broadcast %28 : vector<1x128xf32> to vector<5x128xf32>
      %30 = arith.mulf %21, %29 : vector<5x128xf32>
      %cst_9 = arith.constant 0.000000e+00 : f32
      %31 = vector.shape_cast %16 : vector<1x128xi1> to vector<1x128xi1>
      %32 = vector.broadcast %31 : vector<1x128xi1> to vector<5x128xi1>
      %33 = vector.broadcast %cst_9 : f32 to vector<5x128xf32>
      %34 = arith.select %32, %30, %33 : vector<5x128xi1>, vector<5x128xf32>
      %35 = tpu.iota {dimensions = array<i32: 0>} : vector<5x128xi32>
      %36 = vector.broadcast %3 : vector<1x128xi32> to vector<5x128xi32>
      %37 = arith.cmpi eq, %35, %36 : vector<5x128xi32>
      %38 = vector.broadcast %16 : vector<1x128xi1> to vector<5x128xi1>
      %39 = arith.andi %37, %38 : vector<5x128xi1>
      %40 = arith.extui %39 : vector<5x128xi1> to vector<5x128xi32>
      %41 = arith.sitofp %40 : vector<5x128xi32> to vector<5x128xf32>
      %c0_10 = arith.constant 0 : index
      %c0_11 = arith.constant 0 : index
      %c0_12 = arith.constant 0 : index
      %42 = vector.load %arg4[%c0_10, %c0_11, %c0_12] : memref<1x5x1xf32, #tpu.memory_space<vmem>>, vector<1x5x1xf32>
      %43 = vector.shape_cast %42 : vector<1x5x1xf32> to vector<5x1xf32>
      %cst_13 = arith.constant 0.000000e+00 : f32
      %44 = vector.broadcast %cst_13 : f32 to vector<5x128xf32>
      %45 = arith.select %39, %34, %44 : vector<5x128xi1>, vector<5x128xf32>
      %cst_14 = arith.constant dense<0.000000e+00> : vector<5xf32>
      %46 = vector.multi_reduction <add>, %45, %cst_14 [1] : vector<5x128xf32> to vector<5xf32>
      %47 = vector.shape_cast %46 : vector<5xf32> to vector<5x1xf32>
      %48 = arith.addf %43, %47 : vector<5x1xf32>
      %c0_15 = arith.constant 0 : index
      %c0_16 = arith.constant 0 : index
      %c0_17 = arith.constant 0 : index
      %49 = vector.load %arg4[%c0_15, %c0_16, %c0_17] : memref<1x5x1xf32, #tpu.memory_space<vmem>>, vector<1x5x1xf32>
      %50 = vector.shape_cast %49 : vector<1x5x1xf32> to vector<5x1xf32>
      %51 = vector.shape_cast %48 : vector<5x1xf32> to vector<1x5x1xf32>
      tpu.vector_store %arg4[%c0_15, %c0_16, %c0_17], %51 {strides = array<i32>} : memref<1x5x1xf32, #tpu.memory_space<vmem>>, vector<1x5x1xf32>,
      %c0_18 = arith.constant 0 : index
      %c0_19 = arith.constant 0 : index
      %c0_20 = arith.constant 0 : index
      %52 = vector.load %arg5[%c0_18, %c0_19, %c0_20] : memref<1x5x1xf32, #tpu.memory_space<vmem>>, vector<1x5x1xf32>
      %53 = vector.shape_cast %52 : vector<1x5x1xf32> to vector<5x1xf32>
      %54 = arith.addf %34, %41 : vector<5x128xf32>
      %cst_21 = arith.constant dense<0.000000e+00> : vector<5xf32>
      %55 = vector.multi_reduction <add>, %54, %cst_21 [1] : vector<5x128xf32> to vector<5xf32>
      %56 = vector.shape_cast %55 : vector<5xf32> to vector<5x1xf32>
      %57 = arith.addf %53, %56 : vector<5x1xf32>
      %c0_22 = arith.constant 0 : index
      %c0_23 = arith.constant 0 : index
      %c0_24 = arith.constant 0 : index
      %58 = vector.load %arg5[%c0_22, %c0_23, %c0_24] : memref<1x5x1xf32, #tpu.memory_space<vmem>>, vector<1x5x1xf32>
      %59 = vector.shape_cast %58 : vector<1x5x1xf32> to vector<5x1xf32>
      %60 = vector.shape_cast %57 : vector<5x1xf32> to vector<1x5x1xf32>
      tpu.vector_store %arg5[%c0_22, %c0_23, %c0_24], %60 {strides = array<i32>} : memref<1x5x1xf32, #tpu.memory_space<vmem>>, vector<1x5x1xf32>,
    } else {
    }
    %true = arith.constant true
    %11 = arith.xori %8, %true : i1
    %12 = arith.extui %11 : i1 to i32
    %c0_i32_4 = arith.constant 0 : i32
    %13 = arith.cmpi ne, %12, %c0_i32_4 : i32
    scf.if %13 {
      %c0_5 = arith.constant 0 : index
      %c0_6 = arith.constant 0 : index
      %14 = vector.load %arg2[%c0_5, %c0_6] : memref<5x128xf32, #tpu.memory_space<vmem>>, vector<5x128xf32>
      %15 = tpu.iota {dimensions = array<i32: 1>} : vector<1x128xi32>
      %16 = vector.broadcast %6 : i32 to vector<1x128xi32>
      %17 = arith.addi %16, %15 : vector<1x128xi32>
      %c16_i32_7 = arith.constant 16 : i32
      %18 = vector.broadcast %c16_i32_7 : i32 to vector<1x128xi32>
      %19 = arith.cmpi slt, %17, %18 : vector<1x128xi32>
      %c-100_i32 = arith.constant -100 : i32
      %20 = vector.broadcast %c-100_i32 : i32 to vector<1x128xi32>
      %21 = arith.cmpi ne, %3, %20 : vector<1x128xi32>
      %22 = arith.andi %19, %21 : vector<1x128xi1>
      %cst = arith.constant 0.000000e+00 : f32
      %23 = vector.shape_cast %22 : vector<1x128xi1> to vector<1x128xi1>
      %24 = vector.broadcast %23 : vector<1x128xi1> to vector<5x128xi1>
      %25 = vector.broadcast %cst : f32 to vector<5x128xf32>
      %26 = arith.select %24, %14, %25 : vector<5x128xi1>, vector<5x128xf32>
      %cst_8 = arith.constant dense<0xFF800000> : vector<128xf32>
      %27 = vector.multi_reduction <maximumf>, %26, %cst_8 [0] : vector<5x128xf32> to vector<128xf32>
      %28 = vector.shape_cast %27 : vector<128xf32> to vector<1x128xf32>
      %29 = vector.broadcast %28 : vector<1x128xf32> to vector<5x128xf32>
      %30 = arith.subf %26, %29 : vector<5x128xf32>
      %31 = math.exp %30 : vector<5x128xf32>
      %cst_9 = arith.constant dense<0.000000e+00> : vector<128xf32>
      %32 = vector.multi_reduction <add>, %31, %cst_9 [0] : vector<5x128xf32> to vector<128xf32>
      %33 = vector.shape_cast %32 : vector<128xf32> to vector<1x128xf32>
      %34 = tpu.reciprocal %33 {approx = true} : vector<1x128xf32> -> vector<1x128xf32>
      %35 = arith.mulf %33, %34 : vector<1x128xf32>
      %cst_10 = arith.constant 2.000000e+00 : f32
      %36 = vector.broadcast %cst_10 : f32 to vector<1x128xf32>
      %37 = arith.subf %36, %35 : vector<1x128xf32>
      %38 = arith.mulf %34, %37 : vector<1x128xf32>
      %39 = vector.broadcast %38 : vector<1x128xf32> to vector<5x128xf32>
      %40 = arith.mulf %31, %39 : vector<5x128xf32>
      %cst_11 = arith.constant 0.000000e+00 : f32
      %41 = vector.shape_cast %22 : vector<1x128xi1> to vector<1x128xi1>
      %42 = vector.broadcast %41 : vector<1x128xi1> to vector<5x128xi1>
      %43 = vector.broadcast %cst_11 : f32 to vector<5x128xf32>
      %44 = arith.select %42, %40, %43 : vector<5x128xi1>, vector<5x128xf32>
      %45 = tpu.iota {dimensions = array<i32: 0>} : vector<5x128xi32>
      %46 = vector.broadcast %3 : vector<1x128xi32> to vector<5x128xi32>
      %47 = arith.cmpi eq, %45, %46 : vector<5x128xi32>
      %48 = vector.broadcast %22 : vector<1x128xi1> to vector<5x128xi1>
      %49 = arith.andi %47, %48 : vector<5x128xi1>
      %50 = arith.extui %49 : vector<5x128xi1> to vector<5x128xi32>
      %51 = arith.sitofp %50 : vector<5x128xi32> to vector<5x128xf32>
      %c0_12 = arith.constant 0 : index
      %c0_13 = arith.constant 0 : index
      %c0_14 = arith.constant 0 : index
      %52 = vector.load %arg4[%c0_12, %c0_13, %c0_14] : memref<1x5x1xf32, #tpu.memory_space<vmem>>, vector<1x5x1xf32>
      %53 = vector.shape_cast %52 : vector<1x5x1xf32> to vector<5x1xf32>
      %cst_15 = arith.constant 0.000000e+00 : f32
      %54 = vector.broadcast %cst_15 : f32 to vector<5x128xf32>
      %55 = arith.select %49, %44, %54 : vector<5x128xi1>, vector<5x128xf32>
      %cst_16 = arith.constant dense<0.000000e+00> : vector<5xf32>
      %56 = vector.multi_reduction <add>, %55, %cst_16 [1] : vector<5x128xf32> to vector<5xf32>
      %57 = vector.shape_cast %56 : vector<5xf32> to vector<5x1xf32>
      %58 = arith.addf %53, %57 : vector<5x1xf32>
      %c0_17 = arith.constant 0 : index
      %c0_18 = arith.constant 0 : index
      %c0_19 = arith.constant 0 : index
      %59 = vector.load %arg4[%c0_17, %c0_18, %c0_19] : memref<1x5x1xf32, #tpu.memory_space<vmem>>, vector<1x5x1xf32>
      %60 = vector.shape_cast %59 : vector<1x5x1xf32> to vector<5x1xf32>
      %61 = vector.shape_cast %58 : vector<5x1xf32> to vector<1x5x1xf32>
      tpu.vector_store %arg4[%c0_17, %c0_18, %c0_19], %61 {strides = array<i32>} : memref<1x5x1xf32, #tpu.memory_space<vmem>>, vector<1x5x1xf32>,
      %c0_20 = arith.constant 0 : index
      %c0_21 = arith.constant 0 : index
      %c0_22 = arith.constant 0 : index
      %62 = vector.load %arg5[%c0_20, %c0_21, %c0_22] : memref<1x5x1xf32, #tpu.memory_space<vmem>>, vector<1x5x1xf32>
      %63 = vector.shape_cast %62 : vector<1x5x1xf32> to vector<5x1xf32>
      %64 = arith.addf %44, %51 : vector<5x128xf32>
      %cst_23 = arith.constant dense<0.000000e+00> : vector<5xf32>
      %65 = vector.multi_reduction <add>, %64, %cst_23 [1] : vector<5x128xf32> to vector<5xf32>
      %66 = vector.shape_cast %65 : vector<5xf32> to vector<5x1xf32>
      %67 = arith.addf %63, %66 : vector<5x1xf32>
      %c0_24 = arith.constant 0 : index
      %c0_25 = arith.constant 0 : index
      %c0_26 = arith.constant 0 : index
      %68 = vector.load %arg5[%c0_24, %c0_25, %c0_26] : memref<1x5x1xf32, #tpu.memory_space<vmem>>, vector<1x5x1xf32>
      %69 = vector.shape_cast %68 : vector<1x5x1xf32> to vector<5x1xf32>
      %70 = vector.shape_cast %67 : vector<5x1xf32> to vector<1x5x1xf32>
      tpu.vector_store %arg5[%c0_24, %c0_25, %c0_26], %70 {strides = array<i32>} : memref<1x5x1xf32, #tpu.memory_space<vmem>>, vector<1x5x1xf32>,
    } else {
    }
    return
  }
  func.func @transform_0(%arg0: i32, %arg1: i32) -> (i32, i32) {
    %c1_i32 = arith.constant 1 : i32
    %0 = arith.muli %arg0, %c1_i32 : i32
    %1 = arith.addi %0, %arg1 : i32
    %c0_i32 = arith.constant 0 : i32
    %2 = arith.minsi %1, %c0_i32 : i32
    %c0_i32_0 = arith.constant 0 : i32
    %c0_i32_1 = arith.constant 0 : i32
    return %c0_i32_0, %2 : i32, i32
  }
  func.func @transform_1(%arg0: i32, %arg1: i32) -> (i32, i32) {
    %c1_i32 = arith.constant 1 : i32
    %0 = arith.muli %arg0, %c1_i32 : i32
    %1 = arith.addi %0, %arg1 : i32
    %c0_i32 = arith.constant 0 : i32
    %2 = arith.minsi %1, %c0_i32 : i32
    %c0_i32_0 = arith.constant 0 : i32
    %c0_i32_1 = arith.constant 0 : i32
    return %c0_i32_0, %2 : i32, i32
  }
  func.func @transform_2(%arg0: i32, %arg1: i32) -> (i32, i32, i32) {
    %c0_i32 = arith.constant 0 : i32
    %c0_i32_0 = arith.constant 0 : i32
    %c0_i32_1 = arith.constant 0 : i32
    return %arg0, %c0_i32, %c0_i32_0 : i32, i32, i32
  }
  func.func @transform_3(%arg0: i32, %arg1: i32) -> (i32, i32, i32) {
    %c0_i32 = arith.constant 0 : i32
    %c0_i32_0 = arith.constant 0 : i32
    %c0_i32_1 = arith.constant 0 : i32
    return %arg0, %c0_i32, %c0_i32_0 : i32, i32, i32
  }
}

</mosaic_0001>

<llo_original>
// kernel: tpu_custom_call.1
$region0: #{tpu_custom_call.1}
  #allocation0 [shape = 'u32[]', space=smem, size = 0x4, offset = 0x4, fixed_abs, tag = 'smem constant byte address 0x4 - core index']
  #allocation1 [shape = 'u32[72,128]{1,0:T(1,128)}', space=vmem, size = 0x9000, scoped, tag = 'internal scratch']
  %s0 = inlined_call_operand.hbm [shape: f32[5,16], index: 0, kind: input, shape index: {}]
  %s1 = inlined_call_operand.hbm [shape: s32[1,16], index: 1, kind: input, shape index: {}]
  %s2 = inlined_call_operand.vmem [shape: f32[1,5,1], index: 2, kind: output, shape index: {0}]
  %s3 = inlined_call_operand.vmem [shape: f32[1,5,1], index: 3, kind: output, shape index: {1}]
  %4 = xla_tuple %s2, %s3
  %s5 = sld [smem:[#allocation0]]
  $region46: #{tpu_custom_call.1} parent=0
    _
  %s7 = ssub.s32 1, %s5
  %s8 = scalar_select 0, %s7, %s5
  $region1: #{tpu_custom_call.1} parent=0
    #allocation2 [shape = 'u8[4096]{0}', space=vmem, size = 0x1000, scoped, tag = 'input window, operand 0, single buffered']
    #allocation3 [shape = 's32[1]{0}', space=sflag, size = 0x4, scoped, tag = 'scoped memory for tpu_custom_call.1']
    #allocation4 [shape = 'u8[512]{0}', space=vmem, size = 0x400, scoped, tag = 'input window, operand 1, single buffered']
    #allocation5 [shape = 's32[1]{0}', space=sflag, size = 0x4, scoped, tag = 'scoped memory for tpu_custom_call.1']
    %9 = vsyncpa [#allocation3], 0
    %10 = vsyncpa [#allocation5], 0
    // Predicated region
    $region2: #{tpu_custom_call.1} parent=1 // pred_check
      _
    $region3: #{tpu_custom_call.1} parent=1 // pred_check_branch
      %12 = sbr.rel (0) target = $region5
    $region4: #{tpu_custom_call.1} parent=1 // pred_region
      %s13 = sadd.s32 0, 0
      %p14 = scmp.lt.s32.totalorder %s13, 0
      %s15 = scalar_select %p14, %s13, 0
      %17 = vsyncadd [#allocation3], 0
      %s18 = smul.addr %s15, 8
      %s19 = scalar_lea.hbm %s0, %s18
      %s21 = sshll.u32 %s19, 4
      %s22 = int_to_ptr.hbm [resolvable:$true] %s21
      %s23 = sshll.u32 [#allocation2], 4
      %s24 = int_to_ptr.vmem [resolvable:$true] %s23
      %26 = dma.hbm_to_vmem [thread:$0]  %s22, 128, %s24, [#allocation3]
    $region5: #{tpu_custom_call.1} parent=1 // pred_fallthru
      _
    // Predicated region
    $region6: #{tpu_custom_call.1} parent=1 // pred_check
      _
    $region7: #{tpu_custom_call.1} parent=1 // pred_check_branch
      %28 = sbr.rel (0) target = $region9
    $region8: #{tpu_custom_call.1} parent=1 // pred_region
      %s29 = sadd.s32 0, 0
      %p30 = scmp.lt.s32.totalorder %s29, 0
      %s31 = scalar_select %p30, %s29, 0
      %33 = vsyncadd [#allocation5], 0
      %s34 = scalar_lea.hbm %s1, %s31
      %s36 = sshll.u32 %s34, 4
      %s37 = int_to_ptr.hbm [resolvable:$true] %s36
      %s38 = sshll.u32 [#allocation4], 4
      %s39 = int_to_ptr.vmem [resolvable:$true] %s38
      %41 = dma.hbm_to_vmem [thread:$0]  %s37, 16, %s39, [#allocation5]
    $region9: #{tpu_custom_call.1} parent=1 // pred_fallthru
      _
    // Predicated region
    $region10: #{tpu_custom_call.1} parent=1 // pred_check
      _
    $region11: #{tpu_custom_call.1} parent=1 // pred_check_branch
      %43 = sbr.rel (0) target = $region13
    $region12: #{tpu_custom_call.1} parent=1 // pred_region
      %45 = dma.done [#allocation3], 128
    $region13: #{tpu_custom_call.1} parent=1 // pred_fallthru
      _
    // Predicated region
    $region14: #{tpu_custom_call.1} parent=1 // pred_check
      _
    $region15: #{tpu_custom_call.1} parent=1 // pred_check_branch
      %47 = sbr.rel (0) target = $region17
    $region16: #{tpu_custom_call.1} parent=1 // pred_region
      %49 = dma.done [#allocation5], 16
    $region17: #{tpu_custom_call.1} parent=1 // pred_fallthru
      _
    %s50 = sadd.s32 0, 0
    %p51 = scmp.lt.s32.totalorder %s50, 0
    %s52 = scalar_select %p51, %s50, 0
    %s53 = sadd.s32 0, 0
    %p54 = scmp.lt.s32.totalorder %s53, 0
    %s55 = scalar_select %p54, %s53, 0
    %p56 = scmp.eq.s32.totalorder 0, 0
    // Predicated region
    $region18: #{tpu_custom_call.1} parent=1 // pred_check
      %p57 = pneg %p56
    $region19: #{tpu_custom_call.1} parent=1 // pred_check_branch
      %59 = sbr.rel (%p57) target = $region21
    $region20: #{tpu_custom_call.1} parent=1 // pred_region
      %vm60 = vcmask 4096
      %61 = vst.msk [vmem:[%s2] sm:$0x1f] %vm60, 0.0
      %62 = vst.msk [vmem:[%s3] sm:$0x1f] %vm60, 0.0
    $region21: #{tpu_custom_call.1} parent=1 // pred_fallthru
      _
    %v63 = vld [vmem:[#allocation4] sm:$0x1]
    %s64 = sadd.s32 0, 0
    %s65 = smul.u32 %s64, 128
    %s66 = sadd.s32 %s65, 128
    %p67 = scmp.le.s32.totalorder %s66, 16
    // Predicated region
    $region22: #{tpu_custom_call.1} parent=1 // pred_check
      %p68 = pneg %p67
    $region23: #{tpu_custom_call.1} parent=1 // pred_check_branch
      %70 = sbr.rel (%p68) target = $region25
    $region24: #{tpu_custom_call.1} parent=1 // pred_region
      %v71 = vld [vmem:[#allocation2] sm:$0x1f]
      %vm72 = vcmp.ne.s32.totalorder %v63, 4294967196
      %vm73 = vcmask 1044480
      %v74 = vsel %vm73, %v71, -inf
      %v75 = vrot.slane %v74, 4
      %v76 = vmax.f32 %v74, %v75
      %v77 = vrot.slane %v76, 2
      %v78 = vmax.f32 %v76, %v77
      %v79 = vrot.slane %v78, 1
      %v80 = vmax.f32 %v78, %v79
      %v81 = vsub.f32 %v71, %v80
      %v82 = vmul.f32 %v81, 1.442695
      %v83 = vpow.pop %v82
      %v84 = vsel %vm73, %v83, 0.0
      %v85 = vrot.slane %v84, 4
      %v86 = vadd.f32 %v84, %v85
      %v87 = vrot.slane %v86, 2
      %v88 = vadd.f32 %v86, %v87
      %v89 = vrot.slane %v88, 1
      %v90 = vadd.f32 %v88, %v89
      %v91 = vrcp.pop %v90
      %v92 = vmul.f32 %v90, %v91
      %v93 = vsub.f32 2.0, %v92
      %v94 = vmul.f32 %v91, %v93
      %v95 = vmul.f32 %v83, %v94
      %v96 = vsel %vm72, 1, 0
      %v97 = vperm.slane %v96, 0
      %vm98 = vcmp.eq.s32.totalorder %v97, 1
      %v99 = vsel %vm98, %v95, 0.0
      %v100 = vlaneseq
      %v101 = vshrl.u32 %v100, 7
      %v102 = vperm.slane %v63, 0
      %vm103 = vcmp.eq.s32.totalorder %v101, %v102
      %vm104 = vmand %vm103, %vm98
      %v105 = vsel %vm104, 1, 0
      %v106 = vcvt.s32.f32 %v105
      %v107 = vld [vmem:[%s2] sm:$0x1f]
      %v108 = vsel %vm104, %v99, 0.0
      %v109 = vsel %vm73, %v108, 0.0
      %110 = vadd.xlane.f32.xlu0 %v109
      %v111 = vpop.xlane.xlu0 %110
      %v112 = vadd.f32 %v107, %v111
      %vm113 = vcmask 4096
      %114 = vst.msk [vmem:[%s2] sm:$0x1f] %vm113, %v112
      %v115 = vld [vmem:[%s3] sm:$0x1f]
      %v116 = vadd.f32 %v99, %v106
      %v117 = vsel %vm73, %v116, 0.0
      %118 = vadd.xlane.f32.xlu0 %v117
      %v119 = vpop.xlane.xlu0 %118
      %v120 = vadd.f32 %v115, %v119
      %121 = vst.msk [vmem:[%s3] sm:$0x1f] %vm113, %v120
    $region25: #{tpu_custom_call.1} parent=1 // pred_fallthru
      _
    %p122 = scmp.gt.s32.totalorder %s66, 16
    // Predicated region
    $region26: #{tpu_custom_call.1} parent=1 // pred_check
      %p123 = pneg %p122
    $region27: #{tpu_custom_call.1} parent=1 // pred_check_branch
      %125 = sbr.rel (%p123) target = $region29
    $region28: #{tpu_custom_call.1} parent=1 // pred_region
      %v126 = vld [vmem:[#allocation2] sm:$0x1f]
      %v127 = vlaneseq
      %v128 = vand.u32 %v127, 127
      %v129 = vstv %s65
      %v130 = vadd.s32 %v129, %v128
      %vm131 = vcmp.lt.s32.totalorder %v130, 16
      %vm132 = vcmp.ne.s32.totalorder %v63, 4294967196
      %vm133 = vmand %vm131, %vm132
      %v134 = vsel %vm133, 1, 0
      %v135 = vperm.slane %v134, 0
      %vm136 = vcmp.eq.s32.totalorder %v135, 1
      %v137 = vsel %vm136, %v126, 0.0
      %vm138 = vcmask 1044480
      %v139 = vsel %vm138, %v137, -inf
      %v140 = vrot.slane %v139, 4
      %v141 = vmax.f32 %v139, %v140
      %v142 = vrot.slane %v141, 2
      %v143 = vmax.f32 %v141, %v142
      %v144 = vrot.slane %v143, 1
      %v145 = vmax.f32 %v143, %v144
      %v146 = vsub.f32 %v137, %v145
      %v147 = vmul.f32 %v146, 1.442695
      %v148 = vpow.pop %v147
      %v149 = vsel %vm138, %v148, 0.0
      %v150 = vrot.slane %v149, 4
      %v151 = vadd.f32 %v149, %v150
      %v152 = vrot.slane %v151, 2
      %v153 = vadd.f32 %v151, %v152
      %v154 = vrot.slane %v153, 1
      %v155 = vadd.f32 %v153, %v154
      %v156 = vrcp.pop %v155
      %v157 = vmul.f32 %v155, %v156
      %v158 = vsub.f32 2.0, %v157
      %v159 = vmul.f32 %v156, %v158
      %v160 = vmul.f32 %v148, %v159
      %v161 = vsel %vm136, %v160, 0.0
      %v162 = vlaneseq
      %v163 = vshrl.u32 %v162, 7
      %v164 = vperm.slane %v63, 0
      %vm165 = vcmp.eq.s32.totalorder %v163, %v164
      %vm166 = vmand %vm165, %vm136
      %v167 = vsel %vm166, 1, 0
      %v168 = vcvt.s32.f32 %v167
      %v169 = vld [vmem:[%s2] sm:$0x1f]
      %v170 = vsel %vm166, %v161, 0.0
      %v171 = vsel %vm138, %v170, 0.0
      %172 = vadd.xlane.f32.xlu0 %v171
      %v173 = vpop.xlane.xlu0 %172
      %v174 = vadd.f32 %v169, %v173
      %vm175 = vcmask 4096
      %176 = vst.msk [vmem:[%s2] sm:$0x1f] %vm175, %v174
      %v177 = vld [vmem:[%s3] sm:$0x1f]
      %v178 = vadd.f32 %v161, %v168
      %v179 = vsel %vm138, %v178, 0.0
      %180 = vadd.xlane.f32.xlu0 %v179
      %v181 = vpop.xlane.xlu0 %180
      %v182 = vadd.f32 %v177, %v181
      %183 = vst.msk [vmem:[%s3] sm:$0x1f] %vm175, %v182
    $region29: #{tpu_custom_call.1} parent=1 // pred_fallthru
      _
    // Predicated region
    $region30: #{tpu_custom_call.1} parent=1 // pred_check
      _
    $region31: #{tpu_custom_call.1} parent=1 // pred_check_branch
      %185 = sbr.rel (0) target = $region33
    $region32: #{tpu_custom_call.1} parent=1 // pred_region
      _
    $region33: #{tpu_custom_call.1} parent=1 // pred_fallthru
      _
    // Predicated region
    $region34: #{tpu_custom_call.1} parent=1 // pred_check
      _
    $region35: #{tpu_custom_call.1} parent=1 // pred_check_branch
      %187 = sbr.rel (0) target = $region37
    $region36: #{tpu_custom_call.1} parent=1 // pred_region
      _
    $region37: #{tpu_custom_call.1} parent=1 // pred_fallthru
      _
    // Predicated region
    $region38: #{tpu_custom_call.1} parent=1 // pred_check
      _
    $region39: #{tpu_custom_call.1} parent=1 // pred_check_branch
      %189 = sbr.rel (0) target = $region41
    $region40: #{tpu_custom_call.1} parent=1 // pred_region
      _
    $region41: #{tpu_custom_call.1} parent=1 // pred_fallthru
      _
    // Predicated region
    $region42: #{tpu_custom_call.1} parent=1 // pred_check
      _
    $region43: #{tpu_custom_call.1} parent=1 // pred_check_branch
      %191 = sbr.rel (0) target = $region45
    $region44: #{tpu_custom_call.1} parent=1 // pred_region
      _
    $region45: #{tpu_custom_call.1} parent=1 // pred_fallthru
      _
    %192 = vsyncpa [#allocation3], 1
    %193 = vsyncpa [#allocation5], 1

</llo_original>
